<compile_context>
chip_gen: v6e
topology: v6e:2x2x1
jax: 0.10.0
libtpu: 0.0.40
codegen_flags: <defaults>
</compile_context>

<pallas_src>
import functools

import jax
import jax.numpy as jnp
from jax.experimental import pallas as pl
from jax.experimental.pallas import tpu as pltpu

_LANE = 128
_VMEM_LIMIT = 32 * 1024 * 1024  # explicit scoped-VMEM budget, safe on v5e/v6e/v7x


def _round_up(x, m):
    return ((x + m - 1) // m) * m


def _choose_tile_batch(batch):
    """Large tiles (cap 1024), but >= 2 grid steps whenever the batch allows
    so the 'parallel' grid axis shards across both v7x TensorCores."""
    cap = 1024
    b_al = _round_up(batch, 16)
    if b_al <= 16:
        return 16
    if b_al <= cap:
        return max(16, _round_up((batch + 1) // 2, 16))
    return cap


def _num_splits_for(tile_batch):
    # Two independent row groups (MXU/EUP overlap) only when each split still
    # presents M >= 256 to the MXU (v6e/v7x systolic arrays are 256 deep).
    # Note: a user-supplied small tile_batch silently drops the split.
    return 2 if (tile_batch >= 512 and tile_batch % 32 == 0) else 1


# ----------------------------------------------------------------------------
# Kernel bodies
# ----------------------------------------------------------------------------
def _apply_mlp_splits(h_full, wb, num_linears, num_splits, act_dtype):
    """Fused MLP on `num_splits` independent row groups of h_full.

    wb = (w0, b0, w1, b1, ...) refs; weights in their storage dtype (f32/bf16),
    biases always f32.  Returns (list of per-split f32 results, rows_per_split).
    """
    rows = h_full.shape[0] // num_splits
    hs = [h_full[s * rows:(s + 1) * rows, :] for s in range(num_splits)]
    for li in range(num_linears):
        w = wb[2 * li][...]            # (K, N) weight, VMEM-resident
        b = wb[2 * li + 1][...]        # (1, N) bias, f32
        last = li == num_linears - 1
        new_hs = []
        for h in hs:
            # MXU dot in the weight storage dtype, f32 accumulation.
            acc = jnp.dot(h.astype(w.dtype), w,
                          preferred_element_type=jnp.float32) + b
            if not last:
                if act_dtype != jnp.float32:
                    # bf16 tanh / inter-layer storage (v6e/v7x bf16 VPU/EUP).
                    acc = acc.astype(act_dtype)
                acc = jnp.tanh(acc)
            new_hs.append(acc)
        hs = new_hs
    return hs, rows


def _mlp_kernel(num_linears, num_splits, act_dtype, x_ref, *refs):
    """One RHS evaluation: out = MLP(x). refs = (w0,b0,...,w_{L-1},b_{L-1},out)."""
    out_ref = refs[-1]
    wb = refs[:-1]
    hs, rows = _apply_mlp_splits(x_ref[...], wb, num_linears, num_splits,
                                 act_dtype)
    for s in range(num_splits):
        out_ref[s * rows:(s + 1) * rows, :] = hs[s].astype(out_ref.dtype)


def _euler_kernel(num_linears, num_splits, act_dtype, dt, num_steps,
                  x_ref, *refs):
    """Fused explicit-Euler loop: h_{k+1} = h_k + dt * MLP(h_k).

    Grid = (batch tiles [parallel], steps [arbitrary]).  The state lives in a
    VMEM f32 scratch across the step axis; HBM is touched once for x (load at
    step 0) and once for the output (store at the last step).
    refs = (w0, b0, ..., out_ref, h_scratch).
    """
    del num_steps  # trip count comes from the grid
    out_ref = refs[-2]
    h_sc = refs[-1]
    wb = refs[:-2]
    step = pl.program_id(1)

    @pl.when(step == 0)
    def _():
        h_sc[...] = x_ref[...].astype(jnp.float32)

    h = h_sc[...]
    fs, rows = _apply_mlp_splits(h, wb, num_linears, num_splits, act_dtype)
    for s in range(num_splits):
        h_sc[s * rows:(s + 1) * rows, :] = (
            h[s * rows:(s + 1) * rows, :] + dt * fs[s])

    @pl.when(step == pl.num_programs(1) - 1)
    def _():
        out_ref[...] = h_sc[...].astype(out_ref.dtype)


# ----------------------------------------------------------------------------
# Host-side wrappers
# ----------------------------------------------------------------------------
def prepare_params(params, *, weight_dtype=None):
    """Pre-pad/pre-cast the parameters ONCE (call outside any solver loop).

    params: list of (W, b) with W (in, out), b (1, out).
    Internal hidden dims are padded to multiples of 128 (zero rows/cols + zero
    bias are inert through tanh); the first layer's input dim and the last
    layer's output dim stay at the natural Hc so x / out need no feature
    padding in HBM.  Biases are kept in f32 regardless of weight_dtype.
    """
    num = len(params)
    prepared = []
    for i, (w, b) in enumerate(params):
        k, n = w.shape
        k_pad = k if i == 0 else _round_up(k, _LANE)
        n_pad = n if i == num - 1 else _round_up(n, _LANE)
        w_p = jnp.pad(w, ((0, k_pad - k), (0, n_pad - n)))
        if weight_dtype is not None:
            w_p = w_p.astype(weight_dtype)
        b_p = jnp.pad(b, ((0, 0), (0, n_pad - n))).astype(jnp.float32)
        prepared.append((w_p, b_p))
    return prepared


def _weight_specs_and_args(prepared, index_map):
    in_specs, flat = [], []
    for (w_p, b_p) in prepared:
        flat.append(w_p)
        in_specs.append(pl.BlockSpec(w_p.shape, index_map))  # VMEM-resident
        flat.append(b_p)
        in_specs.append(pl.BlockSpec(b_p.shape, index_map))  # VMEM-resident
    return in_specs, flat


def ode_rnn_func_forward_padded(x_p, prepared_params, *, tile_batch,
                                activation_dtype=jnp.float32):
    """Hot-loop entry point: x_p is already row-padded to a multiple of
    tile_batch; returns the padded output (no per-call pad/slice HBM copies)."""
    B_pad, Hc = x_p.shape
    tb = tile_batch
    assert B_pad % tb == 0 and tb % 8 == 0
    num_linears = len(prepared_params)
    num_splits = _num_splits_for(tb)
    act_dtype = jnp.dtype(activation_dtype)

    in_specs = [pl.BlockSpec((tb, Hc), lambda i: (i, 0))]      # x, batch-tiled
    w_specs, flat_args = _weight_specs_and_args(prepared_params,
                                                lambda i: (0, 0))
    in_specs += w_specs
    out_spec = pl.BlockSpec((tb, Hc), lambda i: (i, 0))

    kernel = functools.partial(_mlp_kernel, num_linears, num_splits, act_dtype)
    return pl.pallas_call(
        kernel,
        out_shape=jax.ShapeDtypeStruct((B_pad, Hc), x_p.dtype),
        grid_spec=pltpu.PrefetchScalarGridSpec(
            num_scalar_prefetch=0,
            grid=(B_pad // tb,),
            in_specs=in_specs,
            out_specs=out_spec,
        ),
        compiler_params=pltpu.CompilerParams(
            dimension_semantics=("parallel",),
            vmem_limit_bytes=_VMEM_LIMIT,
        ),
    )(x_p, *flat_args)


def ode_rnn_func_forward(t, x, params, *, tile_batch=None, weight_dtype=None,
                         activation_dtype=jnp.float32):
    """Pallas forward for _ODERNNFunc.  `t` is unused (API parity with torch).

    Convenience wrapper: pads the batch rows, calls the kernel, slices back.
    For ODE-solver loops, call prepare_params() once and keep the state in the
    row-padded layout with ode_rnn_func_forward_padded() (or use
    ode_rnn_euler_fused) to avoid per-call pad/slice HBM traffic.
    """
    del t  # the PyTorch module ignores t
    B, Hc = x.shape
    assert params[0][0].shape[0] == Hc and params[-1][0].shape[1] == Hc
    prepared = prepare_params(params, weight_dtype=weight_dtype)

    tb = _choose_tile_batch(B) if tile_batch is None else tile_batch
    assert tb % (8 if jnp.dtype(x.dtype).itemsize >= 4 else 16) == 0
    B_pad = _round_up(B, tb)
    x_p = jnp.pad(x, ((0, B_pad - B), (0, 0))) if B_pad != B else x

    out_p = ode_rnn_func_forward_padded(x_p, prepared, tile_batch=tb,
                                        activation_dtype=activation_dtype)
    return out_p[:B] if B_pad != B else out_p


def ode_rnn_euler_fused(x, params, dt, num_steps, *, tile_batch=None,
                        weight_dtype=None, activation_dtype=jnp.float32):
    """h_{k+1} = h_k + dt * MLP(h_k), num_steps steps, fully fused in one call.

    State stays in VMEM scratch for all steps; weights stay resident.
    # TODO(synk): adaptive / higher-order solvers (data-dependent dt, RK
    # stages) would need dt in SMEM and an in-kernel stage loop.
    """
    B, Hc = x.shape
    prepared = prepare_params(params, weight_dtype=weight_dtype)
    num_linears = len(prepared)

    tb = _choose_tile_batch(B) if tile_batch is None else tile_batch
    num_splits = _num_splits_for(tb)
    act_dtype = jnp.dtype(activation_dtype)
    B_pad = _round_up(B, tb)
    x_p = jnp.pad(x, ((0, B_pad - B), (0, 0))) if B_pad != B else x

    in_specs = [pl.BlockSpec((tb, Hc), lambda i, s: (i, 0))]
    w_specs, flat_args = _weight_specs_and_args(prepared, lambda i, s: (0, 0))
    in_specs += w_specs
    out_spec = pl.BlockSpec((tb, Hc), lambda i, s: (i, 0))

    kernel = functools.partial(_euler_kernel, num_linears, num_splits,
                               act_dtype, float(dt), int(num_steps))
    out_p = pl.pallas_call(
        kernel,
        out_shape=jax.ShapeDtypeStruct((B_pad, Hc), x.dtype),
        grid_spec=pltpu.PrefetchScalarGridSpec(
            num_scalar_prefetch=0,
            grid=(B_pad // tb, int(num_steps)),
            in_specs=in_specs,
            out_specs=out_spec,
            scratch_shapes=[pltpu.VMEM((tb, Hc), jnp.float32)],
        ),
        compiler_params=pltpu.CompilerParams(
            dimension_semantics=("parallel", "arbitrary"),
            vmem_limit_bytes=_VMEM_LIMIT,
        ),
    )(x_p, *flat_args)
    return out_p[:B] if B_pad != B else out_p


# ----------------------------------------------------------------------------
# Parameter init + pure-JAX references
# ----------------------------------------------------------------------------
def init_params(key, hidden_channels, hidden_hidden_channels, num_hidden_layers,
                dtype=jnp.float32):
    """nn.Linear-style init (uniform +-1/sqrt(fan_in)). W: (in, out), b: (1, out)."""
    dims = [(hidden_channels, hidden_hidden_channels)]
    dims += [(hidden_hidden_channels, hidden_hidden_channels)] * (num_hidden_layers - 1)
    dims += [(hidden_hidden_channels, hidden_channels)]
    params = []
    for (fan_in, fan_out) in dims:
        key, kw, kb = jax.random.split(key, 3)
        bound = 1.0 / (fan_in ** 0.5)
        w = jax.random.uniform(kw, (fan_in, fan_out), dtype, -bound, bound)
        b = jax.random.uniform(kb, (1, fan_out), dtype, -bound, bound)
        params.append((w, b))
    return params


def reference_forward(t, x, params):
    del t
    h = x.astype(jnp.float32)
    n = len(params)
    for li, (w, b) in enumerate(params):
        h = h @ w.astype(jnp.float32) + b.astype(jnp.float32)
        if li < n - 1:
            h = jnp.tanh(h)
    return h


def reference_euler(x, params, dt, num_steps):
    h = x.astype(jnp.float32)
    for _ in range(num_steps):
        h = h + dt * reference_forward(None, h, params)
    return h.astype(x.dtype)


# ----------------------------------------------------------------------------
if __name__ == "__main__":
    hidden_channels = 32
    hidden_hidden_channels = 64
    num_hidden_layers = 3
    batch = 8

    key = jax.random.PRNGKey(0)
    key, kx = jax.random.split(key)
    x = jax.random.normal(kx, (batch, hidden_channels), jnp.float32)
    t = jnp.float32(0.0)  # unused, mirrors the PyTorch signature

    params = init_params(key, hidden_channels, hidden_hidden_channels,
                         num_hidden_layers)

    # Small native-shape run (f32 weights, f32 activations).
    out = jax.block_until_ready(ode_rnn_func_forward(t, x, params))
    ref = reference_forward(t, x, params)
    assert out.shape == (batch, hidden_channels)
    assert jnp.allclose(out, ref, atol=1e-4, rtol=1e-4)

    # Medium fused batch: tile chooser produces >= 2 "parallel" grid steps
    # (megacore sharding on v7x) and exercises batch padding.
    x_big = jax.random.normal(jax.random.PRNGKey(1), (300, hidden_channels),
                              jnp.float32)
    out_big = jax.block_until_ready(ode_rnn_func_forward(t, x_big, params))
    ref_big = reference_forward(t, x_big, params)
    assert jnp.allclose(out_big, ref_big, atol=1e-4, rtol=1e-4)

    # Large fused batch: tb = 1024 tiles and the 2-way row split (M >= 256
    # per dot) for MXU/EUP overlap.
    x_huge = jax.random.normal(jax.random.PRNGKey(2), (2048, hidden_channels),
                               jnp.float32)
    out_huge = jax.block_until_ready(ode_rnn_func_forward(t, x_huge, params))
    ref_huge = reference_forward(t, x_huge, params)
    assert jnp.allclose(out_huge, ref_huge, atol=1e-4, rtol=1e-4)

    # bf16 weights (recommended on all generations) + bf16 activation path
    # (v6e/v7x); biases stay f32, accumulation stays f32.
    out_bf16 = jax.block_until_ready(
        ode_rnn_func_forward(t, x, params, weight_dtype=jnp.bfloat16,
                             activation_dtype=jnp.bfloat16))
    assert jnp.allclose(out_bf16, ref, atol=5e-2, rtol=5e-2)

    # Fused explicit-Euler time loop: state never leaves VMEM between steps.
    num_steps, dt = 16, 0.05
    out_euler = jax.block_until_ready(
        ode_rnn_euler_fused(x_big, params, dt, num_steps))
    ref_euler = reference_euler(x_big, params, dt, num_steps)
    assert jnp.allclose(out_euler, ref_euler, atol=1e-3, rtol=1e-3)

    print("KERNEL_OK")
</pallas_src>

<mosaic_0001>
module attributes {stable_mosaic.version = 11 : i64} {
  func.func @_mlp_kernel(%arg0: i32, %arg1: memref<16x32xf32, #tpu.memory_space<vmem>>, %arg2: memref<32x128xf32, #tpu.memory_space<vmem>>, %arg3: memref<1x128xf32, #tpu.memory_space<vmem>>, %arg4: memref<128x128xf32, #tpu.memory_space<vmem>>, %arg5: memref<1x128xf32, #tpu.memory_space<vmem>>, %arg6: memref<128x128xf32, #tpu.memory_space<vmem>>, %arg7: memref<1x128xf32, #tpu.memory_space<vmem>>, %arg8: memref<128x32xf32, #tpu.memory_space<vmem>>, %arg9: memref<1x32xf32, #tpu.memory_space<vmem>>, %arg10: memref<16x32xf32, #tpu.memory_space<vmem>>) attributes {dimension_semantics = [#tpu.dimension_semantics<parallel>], iteration_bounds = array<i64: 1>, scalar_prefetch = 0 : i64, scratch_operands = 0 : i64, tpu.core_type = #tpu.core_type<tc>, window_params = [{transform_indices = @transform_0, window_bounds = array<i64: 16, 32>}, {pipeline_mode = #tpu.pipeline_mode<synchronous>, transform_indices = @transform_1, window_bounds = array<i64: 32, 128>}, {pipeline_mode = #tpu.pipeline_mode<synchronous>, transform_indices = @transform_2, window_bounds = array<i64: 1, 128>}, {pipeline_mode = #tpu.pipeline_mode<synchronous>, transform_indices = @transform_3, window_bounds = array<i64: 128, 128>}, {pipeline_mode = #tpu.pipeline_mode<synchronous>, transform_indices = @transform_4, window_bounds = array<i64: 1, 128>}, {pipeline_mode = #tpu.pipeline_mode<synchronous>, transform_indices = @transform_5, window_bounds = array<i64: 128, 128>}, {pipeline_mode = #tpu.pipeline_mode<synchronous>, transform_indices = @transform_6, window_bounds = array<i64: 1, 128>}, {pipeline_mode = #tpu.pipeline_mode<synchronous>, transform_indices = @transform_7, window_bounds = array<i64: 128, 32>}, {pipeline_mode = #tpu.pipeline_mode<synchronous>, transform_indices = @transform_8, window_bounds = array<i64: 1, 32>}, {transform_indices = @transform_9, window_bounds = array<i64: 16, 32>}]} {
    %c0 = arith.constant 0 : index
    %c0_0 = arith.constant 0 : index
    %0 = vector.load %arg1[%c0, %c0_0] : memref<16x32xf32, #tpu.memory_space<vmem>>, vector<16x32xf32>
    %c0_1 = arith.constant 0 : index
    %c0_2 = arith.constant 0 : index
    %1 = vector.load %arg2[%c0_1, %c0_2] : memref<32x128xf32, #tpu.memory_space<vmem>>, vector<32x128xf32>
    %c0_3 = arith.constant 0 : index
    %c0_4 = arith.constant 0 : index
    %2 = vector.load %arg3[%c0_3, %c0_4] : memref<1x128xf32, #tpu.memory_space<vmem>>, vector<1x128xf32>
    %cst = arith.constant dense<0.000000e+00> : vector<16x128xf32>
    %3 = tpu.matmul %0, %1, %cst {dimension_numbers = #tpu.dot_dimension_numbers<[1], [0], [0], [1], [0, 0, 1, 1], [], []>} : vector<16x32xf32>, vector<32x128xf32>, vector<16x128xf32> -> vector<16x128xf32>
    %4 = vector.broadcast %2 : vector<1x128xf32> to vector<16x128xf32>
    %5 = arith.addf %3, %4 : vector<16x128xf32>
    %6 = math.tanh %5 : vector<16x128xf32>
    %c0_5 = arith.constant 0 : index
    %c0_6 = arith.constant 0 : index
    %7 = vector.load %arg4[%c0_5, %c0_6] : memref<128x128xf32, #tpu.memory_space<vmem>>, vector<128x128xf32>
    %c0_7 = arith.constant 0 : index
    %c0_8 = arith.constant 0 : index
    %8 = vector.load %arg5[%c0_7, %c0_8] : memref<1x128xf32, #tpu.memory_space<vmem>>, vector<1x128xf32>
    %cst_9 = arith.constant dense<0.000000e+00> : vector<16x128xf32>
    %9 = tpu.matmul %6, %7, %cst_9 {dimension_numbers = #tpu.dot_dimension_numbers<[1], [0], [0], [1], [0, 0, 1, 1], [], []>} : vector<16x128xf32>, vector<128x128xf32>, vector<16x128xf32> -> vector<16x128xf32>
    %10 = vector.broadcast %8 : vector<1x128xf32> to vector<16x128xf32>
    %11 = arith.addf %9, %10 : vector<16x128xf32>
    %12 = math.tanh %11 : vector<16x128xf32>
    %c0_10 = arith.constant 0 : index
    %c0_11 = arith.constant 0 : index
    %13 = vector.load %arg6[%c0_10, %c0_11] : memref<128x128xf32, #tpu.memory_space<vmem>>, vector<128x128xf32>
    %c0_12 = arith.constant 0 : index
    %c0_13 = arith.constant 0 : index
    %14 = vector.load %arg7[%c0_12, %c0_13] : memref<1x128xf32, #tpu.memory_space<vmem>>, vector<1x128xf32>
    %cst_14 = arith.constant dense<0.000000e+00> : vector<16x128xf32>
    %15 = tpu.matmul %12, %13, %cst_14 {dimension_numbers = #tpu.dot_dimension_numbers<[1], [0], [0], [1], [0, 0, 1, 1], [], []>} : vector<16x128xf32>, vector<128x128xf32>, vector<16x128xf32> -> vector<16x128xf32>
    %16 = vector.broadcast %14 : vector<1x128xf32> to vector<16x128xf32>
    %17 = arith.addf %15, %16 : vector<16x128xf32>
    %18 = math.tanh %17 : vector<16x128xf32>
    %c0_15 = arith.constant 0 : index
    %c0_16 = arith.constant 0 : index
    %19 = vector.load %arg8[%c0_15, %c0_16] : memref<128x32xf32, #tpu.memory_space<vmem>>, vector<128x32xf32>
    %c0_17 = arith.constant 0 : index
    %c0_18 = arith.constant 0 : index
    %20 = vector.load %arg9[%c0_17, %c0_18] : memref<1x32xf32, #tpu.memory_space<vmem>>, vector<1x32xf32>
    %cst_19 = arith.constant dense<0.000000e+00> : vector<16x32xf32>
    %21 = tpu.matmul %18, %19, %cst_19 {dimension_numbers = #tpu.dot_dimension_numbers<[1], [0], [0], [1], [0, 0, 1, 1], [], []>} : vector<16x128xf32>, vector<128x32xf32>, vector<16x32xf32> -> vector<16x32xf32>
    %22 = vector.broadcast %20 : vector<1x32xf32> to vector<16x32xf32>
    %23 = arith.addf %21, %22 : vector<16x32xf32>
    %c0_20 = arith.constant 0 : index
    %c0_21 = arith.constant 0 : index
    %24 = vector.load %arg10[%c0_20, %c0_21] : memref<16x32xf32, #tpu.memory_space<vmem>>, vector<16x32xf32>
    tpu.vector_store %arg10[%c0_20, %c0_21], %23 {strides = array<i32>} : memref<16x32xf32, #tpu.memory_space<vmem>>, vector<16x32xf32>,
    return
  }
  func.func @transform_0(%arg0: i32) -> (i32, i32) {
    %c0_i32 = arith.constant 0 : i32
    %c0_i32_0 = arith.constant 0 : i32
    return %arg0, %c0_i32 : i32, i32
  }
  func.func @transform_1(%arg0: i32) -> (i32, i32) {
    %c0_i32 = arith.constant 0 : i32
    %c0_i32_0 = arith.constant 0 : i32
    %c0_i32_1 = arith.constant 0 : i32
    return %c0_i32, %c0_i32_0 : i32, i32
  }
  func.func @transform_2(%arg0: i32) -> (i32, i32) {
    %c0_i32 = arith.constant 0 : i32
    %c0_i32_0 = arith.constant 0 : i32
    %c0_i32_1 = arith.constant 0 : i32
    return %c0_i32, %c0_i32_0 : i32, i32
  }
  func.func @transform_3(%arg0: i32) -> (i32, i32) {
    %c0_i32 = arith.constant 0 : i32
    %c0_i32_0 = arith.constant 0 : i32
    %c0_i32_1 = arith.constant 0 : i32
    return %c0_i32, %c0_i32_0 : i32, i32
  }
  func.func @transform_4(%arg0: i32) -> (i32, i32) {
    %c0_i32 = arith.constant 0 : i32
    %c0_i32_0 = arith.constant 0 : i32
    %c0_i32_1 = arith.constant 0 : i32
    return %c0_i32, %c0_i32_0 : i32, i32
  }
  func.func @transform_5(%arg0: i32) -> (i32, i32) {
    %c0_i32 = arith.constant 0 : i32
    %c0_i32_0 = arith.constant 0 : i32
    %c0_i32_1 = arith.constant 0 : i32
    return %c0_i32, %c0_i32_0 : i32, i32
  }
  func.func @transform_6(%arg0: i32) -> (i32, i32) {
    %c0_i32 = arith.constant 0 : i32
    %c0_i32_0 = arith.constant 0 : i32
    %c0_i32_1 = arith.constant 0 : i32
    return %c0_i32, %c0_i32_0 : i32, i32
  }
  func.func @transform_7(%arg0: i32) -> (i32, i32) {
    %c0_i32 = arith.constant 0 : i32
    %c0_i32_0 = arith.constant 0 : i32
    %c0_i32_1 = arith.constant 0 : i32
    return %c0_i32, %c0_i32_0 : i32, i32
  }
  func.func @transform_8(%arg0: i32) -> (i32, i32) {
    %c0_i32 = arith.constant 0 : i32
    %c0_i32_0 = arith.constant 0 : i32
    %c0_i32_1 = arith.constant 0 : i32
    return %c0_i32, %c0_i32_0 : i32, i32
  }
  func.func @transform_9(%arg0: i32) -> (i32, i32) {
    %c0_i32 = arith.constant 0 : i32
    %c0_i32_0 = arith.constant 0 : i32
    return %arg0, %c0_i32 : i32, i32
  }
}

</mosaic_0001>

<llo_original>
// kernel: tpu_custom_call.1
$region0: #{tpu_custom_call.1}
  #allocation0 [shape = 'u32[]', space=smem, size = 0x4, offset = 0x4, fixed_abs, tag = 'smem constant byte address 0x4 - core index']
  #allocation1 [shape = 'u32[144,128]{1,0:T(1,128)}', space=vmem, size = 0x12000, scoped, tag = 'internal scratch']
  %s0 = inlined_call_operand.hbm [shape: f32[16,32], index: 0, kind: input, shape index: {}]
  %s1 = inlined_call_operand.vmem [shape: f32[32,128], index: 1, kind: input, shape index: {}]
  %s2 = inlined_call_operand.vmem [shape: f32[1,128], index: 2, kind: input, shape index: {}]
  %s3 = inlined_call_operand.vmem [shape: f32[128,128], index: 3, kind: input, shape index: {}]
  %s4 = inlined_call_operand.vmem [shape: f32[1,128], index: 4, kind: input, shape index: {}]
  %s5 = inlined_call_operand.hbm [shape: f32[128,128], index: 5, kind: input, shape index: {}]
  %s6 = inlined_call_operand.vmem [shape: f32[1,128], index: 6, kind: input, shape index: {}]
  %s7 = inlined_call_operand.vmem [shape: f32[128,32], index: 7, kind: input, shape index: {}]
  %s8 = inlined_call_operand.vmem [shape: f32[1,32], index: 8, kind: input, shape index: {}]
  %s9 = inlined_call_operand.hbm [shape: f32[16,32], index: 9, kind: output, shape index: {}]
  %s10 = sld [smem:[#allocation0]]
  $region54: #{tpu_custom_call.1} parent=0
    _
  %s12 = ssub.s32 1, %s10
  %s13 = scalar_select 0, %s12, %s10
  $region1: #{tpu_custom_call.1} parent=0
    #allocation2 [shape = 'u8[8192]{0}', space=vmem, size = 0x2000, scoped, tag = 'input window, operand 0, single buffered']
    #allocation3 [shape = 's32[1]{0}', space=sflag, size = 0x4, scoped, tag = 'scoped memory for tpu_custom_call.1']
    #allocation4 [shape = 's32[1]{0}', space=sflag, size = 0x4, scoped, tag = 'scoped memory for tpu_custom_call.1']
    #allocation5 [shape = 'u8[65536]{0}', space=vmem, size = 0x10000, scoped, tag = 'input window, operand 5, single buffered']
    #allocation6 [shape = 's32[1]{0}', space=sflag, size = 0x4, scoped, tag = 'scoped memory for tpu_custom_call.1']
    #allocation7 [shape = 'u8[8192]{0}', space=vmem, size = 0x2000, scoped, tag = 'output window, operand 0, single buffered']
    %14 = vsyncpa [#allocation3], 0
    %15 = vsyncpa [#allocation6], 0
    %16 = vsyncpa [#allocation4], 0
    // Predicated region
    $region2: #{tpu_custom_call.1} parent=1 // pred_check
      _
    $region3: #{tpu_custom_call.1} parent=1 // pred_check_branch
      %18 = sbr.rel (0) target = $region5
    $region4: #{tpu_custom_call.1} parent=1 // pred_region
      %s20 = ssub.s32 256, 256
      %21 = vsyncadd [#allocation3], %s20
      %s22 = sshll.u32 [#allocation2], 4
      %s23 = int_to_ptr.vmem [resolvable:$true] %s22
      %28 = dma.hbm_to_vmem [thread:$0]  %s0, 256, %s23, [#allocation3], 128, 128, 8
    $region5: #{tpu_custom_call.1} parent=1 // pred_fallthru
      _
    // Predicated region
    $region6: #{tpu_custom_call.1} parent=1 // pred_check
      _
    $region7: #{tpu_custom_call.1} parent=1 // pred_check_branch
      %30 = sbr.rel (0) target = $region9
    $region8: #{tpu_custom_call.1} parent=1 // pred_region
      _
    $region9: #{tpu_custom_call.1} parent=1 // pred_fallthru
      _
    // Predicated region
    $region10: #{tpu_custom_call.1} parent=1 // pred_check
      _
    $region11: #{tpu_custom_call.1} parent=1 // pred_check_branch
      %32 = sbr.rel (0) target = $region13
    $region12: #{tpu_custom_call.1} parent=1 // pred_region
      _
    $region13: #{tpu_custom_call.1} parent=1 // pred_fallthru
      _
    // Predicated region
    $region14: #{tpu_custom_call.1} parent=1 // pred_check
      _
    $region15: #{tpu_custom_call.1} parent=1 // pred_check_branch
      %34 = sbr.rel (0) target = $region17
    $region16: #{tpu_custom_call.1} parent=1 // pred_region
      _
    $region17: #{tpu_custom_call.1} parent=1 // pred_fallthru
      _
    // Predicated region
    $region18: #{tpu_custom_call.1} parent=1 // pred_check
      _
    $region19: #{tpu_custom_call.1} parent=1 // pred_check_branch
      %36 = sbr.rel (0) target = $region21
    $region20: #{tpu_custom_call.1} parent=1 // pred_region
      _
    $region21: #{tpu_custom_call.1} parent=1 // pred_fallthru
      _
    // Predicated region
    $region22: #{tpu_custom_call.1} parent=1 // pred_check
      _
    $region23: #{tpu_custom_call.1} parent=1 // pred_check_branch
      %38 = sbr.rel (0) target = $region25
    $region24: #{tpu_custom_call.1} parent=1 // pred_region
      %s40 = ssub.s32 2048, 2048
      %41 = vsyncadd [#allocation6], %s40
      %s42 = sshll.u32 [#allocation5], 4
      %s43 = int_to_ptr.vmem [resolvable:$true] %s42
      %48 = dma.hbm_to_vmem [thread:$0]  %s5, 2048, %s43, [#allocation6], 128, 128, 8
    $region25: #{tpu_custom_call.1} parent=1 // pred_fallthru
      _
    // Predicated region
    $region26: #{tpu_custom_call.1} parent=1 // pred_check
      _
    $region27: #{tpu_custom_call.1} parent=1 // pred_check_branch
      %50 = sbr.rel (0) target = $region29
    $region28: #{tpu_custom_call.1} parent=1 // pred_region
      _
    $region29: #{tpu_custom_call.1} parent=1 // pred_fallthru
      _
    // Predicated region
    $region30: #{tpu_custom_call.1} parent=1 // pred_check
      _
    $region31: #{tpu_custom_call.1} parent=1 // pred_check_branch
      %52 = sbr.rel (0) target = $region33
    $region32: #{tpu_custom_call.1} parent=1 // pred_region
      _
    $region33: #{tpu_custom_call.1} parent=1 // pred_fallthru
      _
    // Predicated region
    $region34: #{tpu_custom_call.1} parent=1 // pred_check
      _
    $region35: #{tpu_custom_call.1} parent=1 // pred_check_branch
      %54 = sbr.rel (0) target = $region37
    $region36: #{tpu_custom_call.1} parent=1 // pred_region
      _
    $region37: #{tpu_custom_call.1} parent=1 // pred_fallthru
      _
    // Predicated region
    $region38: #{tpu_custom_call.1} parent=1 // pred_check
      _
    $region39: #{tpu_custom_call.1} parent=1 // pred_check_branch
      %56 = sbr.rel (0) target = $region41
    $region40: #{tpu_custom_call.1} parent=1 // pred_region
      %57 = dma.done [#allocation3], 256
    $region41: #{tpu_custom_call.1} parent=1 // pred_fallthru
      _
    // Predicated region
    $region42: #{tpu_custom_call.1} parent=1 // pred_check
      _
    $region43: #{tpu_custom_call.1} parent=1 // pred_check_branch
      %59 = sbr.rel (0) target = $region45
    $region44: #{tpu_custom_call.1} parent=1 // pred_region
      %60 = dma.done [#allocation6], 2048
    $region45: #{tpu_custom_call.1} parent=1 // pred_fallthru
      _
    %v61 = vld [vmem:[#allocation2] sm:$0xff]
    %v62 = vld [vmem:[#allocation2 + $0x8] sm:$0xff]
    %v63 = vld [vmem:[%s1] sm:$0xff]
    %v64 = vld [vmem:[%s1 + $0x8] sm:$0xff]
    %v65 = vld [vmem:[%s1 + $0x10] sm:$0xff]
    %v66 = vld [vmem:[%s1 + $0x18] sm:$0xff]
    %v67 = vld [vmem:[%s2] sm:$0x1]
    %v69 = vlaneseq
    %v70 = vshrl.u32 %v69, 7
    %v71 = vsub.s32 0, %v70
    %v72 = vrot.slane %v67, %v71
    %vm74 = vcmask 261120
    %v76 = vsel %vm74, %v61, 0
    %v79 = vsel %vm74, %v62, 0
    %81 = vmatprep.subr.mxu0 0.0
    %82 = vmatpush1.msra.mxu0 0.0
    %83 = vmatprep.subr.mxu0 0.0
    %84 = vmatpush1.msra.mxu0 0.0
    %85 = vmatprep.subr.mxu0 0.0
    %86 = vmatpush1.msra.mxu0 0.0
    %87 = vmatprep.subr.mxu0 0.0
    %88 = vmatpush1.msra.mxu0 0.0
    %89 = vmatprep.subr.mxu0 0.0
    %90 = vmatpush1.msra.mxu0 0.0
    %91 = vmatprep.subr.mxu0 0.0
    %92 = vmatpush1.msra.mxu0 0.0
    %93 = vmatprep.subr.mxu0 0.0
    %94 = vmatpush1.msra.mxu0 0.0
    %95 = vmatprep.subr.mxu0 0.0
    %96 = vmatpush1.msra.mxu0 0.0
    %97 = vmatprep.subr.mxu0 0.0
    %98 = vmatpush1.msra.mxu0 0.0
    %99 = vmatprep.subr.mxu0 0.0
    %100 = vmatpush1.msra.mxu0 0.0
    %101 = vmatprep.subr.mxu0 0.0
    %102 = vmatpush1.msra.mxu0 0.0
    %103 = vmatprep.subr.mxu0 0.0
    %104 = vmatpush1.msra.mxu0 0.0
    %105 = vmatprep.subr.mxu0 0.0
    %106 = vmatpush1.msra.mxu0 %v66
    %107 = vmatprep.subr.mxu0 0.0
    %108 = vmatpush1.msra.mxu0 %v65
    %109 = vmatprep.subr.mxu0 0.0
    %110 = vmatpush1.msra.mxu0 %v64
    %111 = vmatprep.subr.mxu0 0.0
    %112 = vmatpush1.msra.mxu0 %v63
    %113 = vmatprep.subr.mxu0 0.0
    %114 = vmatpush2.msra.mxu0 0.0
    %115 = vmatprep.subr.mxu0 0.0
    %116 = vmatpush2.msra.mxu0 0.0
    %117 = vmatprep.subr.mxu0 0.0
    %118 = vmatpush2.msra.mxu0 0.0
    %119 = vmatprep.subr.mxu0 0.0
    %120 = vmatpush2.msra.mxu0 0.0
    %121 = vmatprep.subr.mxu0 0.0
    %122 = vmatpush2.msra.mxu0 0.0
    %123 = vmatprep.subr.mxu0 0.0
    %124 = vmatpush2.msra.mxu0 0.0
    %125 = vmatprep.subr.mxu0 0.0
    %126 = vmatpush2.msra.mxu0 0.0
    %127 = vmatprep.subr.mxu0 0.0
    %128 = vmatpush2.msra.mxu0 0.0
    %129 = vmatprep.subr.mxu0 0.0
    %130 = vmatpush2.msra.mxu0 0.0
    %131 = vmatprep.subr.mxu0 0.0
    %132 = vmatpush2.msra.mxu0 0.0
    %133 = vmatprep.subr.mxu0 0.0
    %134 = vmatpush2.msra.mxu0 0.0
    %135 = vmatprep.subr.mxu0 0.0
    %136 = vmatpush2.msra.mxu0 0.0
    %137 = vmatprep.subr.mxu0 0.0
    %138 = vmatpush2.msra.mxu0 0.0
    %139 = vmatprep.subr.mxu0 0.0
    %140 = vmatpush2.msra.mxu0 0.0
    %141 = vmatprep.subr.mxu0 0.0
    %142 = vmatpush2.msra.mxu0 0.0
    %143 = vmatprep.subr.mxu0 0.0
    %144 = vmatpush2.msra.mxu0 0.0
    %145 = vmatprep.mubr.f32.mxu0 0.0
    %146 = vmatmul.mubr.f32.gmra.mxu0 %v76
    %v147 = vpop.f32.mrf.mxu0
    %v148 = vadd.f32 %v72, %v147
    %v149 = vpop.f32.mrf.mxu0
    %150 = vmatprep.mubr.f32.mxu0 0.0
    %151 = vmatmul.mubr.f32.gmra.mxu0 %v79
    %v152 = vpop.f32.mrf.mxu0
    %v153 = vadd.f32 %v72, %v152
    %v154 = vpop.f32.mrf.mxu0
    %155 = vdwg.mxu0
    %v156 = vtanh.pop %v148
    %v157 = vtanh.pop %v153
    %v158 = vld [vmem:[%s3] sm:$0xff]
    %v159 = vld [vmem:[%s3 + $0x8] sm:$0xff]
    %v160 = vld [vmem:[%s3 + $0x10] sm:$0xff]
    %v161 = vld [vmem:[%s3 + $0x18] sm:$0xff]
    %v162 = vld [vmem:[%s3 + $0x20] sm:$0xff]
    %v163 = vld [vmem:[%s3 + $0x28] sm:$0xff]
    %v164 = vld [vmem:[%s3 + $0x30] sm:$0xff]
    %v165 = vld [vmem:[%s3 + $0x38] sm:$0xff]
    %v166 = vld [vmem:[%s3 + $0x40] sm:$0xff]
    %v167 = vld [vmem:[%s3 + $0x48] sm:$0xff]
    %v168 = vld [vmem:[%s3 + $0x50] sm:$0xff]
    %v169 = vld [vmem:[%s3 + $0x58] sm:$0xff]
    %v170 = vld [vmem:[%s3 + $0x60] sm:$0xff]
    %v171 = vld [vmem:[%s3 + $0x68] sm:$0xff]
    %v172 = vld [vmem:[%s3 + $0x70] sm:$0xff]
    %v173 = vld [vmem:[%s3 + $0x78] sm:$0xff]
    %v174 = vld [vmem:[%s4] sm:$0x1]
    %v176 = vlaneseq
    %v177 = vshrl.u32 %v176, 7
    %v178 = vsub.s32 0, %v177
    %v179 = vrot.slane %v174, %v178
    %181 = vmatprep.subr.mxu0 0.0
    %182 = vmatpush1.msra.mxu0 %v173
    %183 = vmatprep.subr.mxu0 0.0
    %184 = vmatpush1.msra.mxu0 %v172
    %185 = vmatprep.subr.mxu0 0.0
    %186 = vmatpush1.msra.mxu0 %v171
    %187 = vmatprep.subr.mxu0 0.0
    %188 = vmatpush1.msra.mxu0 %v170
    %189 = vmatprep.subr.mxu0 0.0
    %190 = vmatpush1.msra.mxu0 %v169
    %191 = vmatprep.subr.mxu0 0.0
    %192 = vmatpush1.msra.mxu0 %v168
    %193 = vmatprep.subr.mxu0 0.0
    %194 = vmatpush1.msra.mxu0 %v167
    %195 = vmatprep.subr.mxu0 0.0
    %196 = vmatpush1.msra.mxu0 %v166
    %197 = vmatprep.subr.mxu0 0.0
    %198 = vmatpush1.msra.mxu0 %v165
    %199 = vmatprep.subr.mxu0 0.0
    %200 = vmatpush1.msra.mxu0 %v164
    %201 = vmatprep.subr.mxu0 0.0
    %202 = vmatpush1.msra.mxu0 %v163
    %203 = vmatprep.subr.mxu0 0.0
    %204 = vmatpush1.msra.mxu0 %v162
    %205 = vmatprep.subr.mxu0 0.0
    %206 = vmatpush1.msra.mxu0 %v161
    %207 = vmatprep.subr.mxu0 0.0
    %208 = vmatpush1.msra.mxu0 %v160
    %209 = vmatprep.subr.mxu0 0.0
    %210 = vmatpush1.msra.mxu0 %v159
    %211 = vmatprep.subr.mxu0 0.0
    %212 = vmatpush1.msra.mxu0 %v158
    %213 = vmatprep.subr.mxu0 0.0
    %214 = vmatpush2.msra.mxu0 0.0
    %215 = vmatprep.subr.mxu0 0.0
    %216 = vmatpush2.msra.mxu0 0.0
    %217 = vmatprep.subr.mxu0 0.0
    %218 = vmatpush2.msra.mxu0 0.0
    %219 = vmatprep.subr.mxu0 0.0
    %220 = vmatpush2.msra.mxu0 0.0
    %221 = vmatprep.subr.mxu0 0.0
    %222 = vmatpush2.msra.mxu0 0.0
    %223 = vmatprep.subr.mxu0 0.0
    %224 = vmatpush2.msra.mxu0 0.0
    %225 = vmatprep.subr.mxu0 0.0
    %226 = vmatpush2.msra.mxu0 0.0
    %227 = vmatprep.subr.mxu0 0.0
    %228 = vmatpush2.msra.mxu0 0.0
    %229 = vmatprep.subr.mxu0 0.0
    %230 = vmatpush2.msra.mxu0 0.0
    %231 = vmatprep.subr.mxu0 0.0
    %232 = vmatpush2.msra.mxu0 0.0
    %233 = vmatprep.subr.mxu0 0.0
    %234 = vmatpush2.msra.mxu0 0.0
    %235 = vmatprep.subr.mxu0 0.0
    %236 = vmatpush2.msra.mxu0 0.0
    %237 = vmatprep.subr.mxu0 0.0
    %238 = vmatpush2.msra.mxu0 0.0
    %239 = vmatprep.subr.mxu0 0.0
    %240 = vmatpush2.msra.mxu0 0.0
    %241 = vmatprep.subr.mxu0 0.0
    %242 = vmatpush2.msra.mxu0 0.0
    %243 = vmatprep.subr.mxu0 0.0
    %244 = vmatpush2.msra.mxu0 0.0
    %245 = vmatprep.mubr.f32.mxu0 0.0
    %246 = vmatmul.mubr.f32.gmra.mxu0 %v156
    %v247 = vpop.f32.mrf.mxu0
    %v248 = vadd.f32 %v179, %v247
    %v249 = vpop.f32.mrf.mxu0
    %250 = vmatprep.mubr.f32.mxu0 0.0
    %251 = vmatmul.mubr.f32.gmra.mxu0 %v157
    %v252 = vpop.f32.mrf.mxu0
    %v253 = vadd.f32 %v179, %v252
    %v254 = vpop.f32.mrf.mxu0
    %255 = vdwg.mxu0
    %v256 = vtanh.pop %v248
    %v257 = vtanh.pop %v253
    %v258 = vld [vmem:[#allocation5] sm:$0xff]
    %v259 = vld [vmem:[#allocation5 + $0x8] sm:$0xff]
    %v260 = vld [vmem:[#allocation5 + $0x10] sm:$0xff]
    %v261 = vld [vmem:[#allocation5 + $0x18] sm:$0xff]
    %v262 = vld [vmem:[#allocation5 + $0x20] sm:$0xff]
    %v263 = vld [vmem:[#allocation5 + $0x28] sm:$0xff]
    %v264 = vld [vmem:[#allocation5 + $0x30] sm:$0xff]
    %v265 = vld [vmem:[#allocation5 + $0x38] sm:$0xff]
    %v266 = vld [vmem:[#allocation5 + $0x40] sm:$0xff]
    %v267 = vld [vmem:[#allocation5 + $0x48] sm:$0xff]
    %v268 = vld [vmem:[#allocation5 + $0x50] sm:$0xff]
    %v269 = vld [vmem:[#allocation5 + $0x58] sm:$0xff]
    %v270 = vld [vmem:[#allocation5 + $0x60] sm:$0xff]
    %v271 = vld [vmem:[#allocation5 + $0x68] sm:$0xff]
    %v272 = vld [vmem:[#allocation5 + $0x70] sm:$0xff]
    %v273 = vld [vmem:[#allocation5 + $0x78] sm:$0xff]
    %v274 = vld [vmem:[%s6] sm:$0x1]
    %v276 = vlaneseq
    %v277 = vshrl.u32 %v276, 7
    %v278 = vsub.s32 0, %v277
    %v279 = vrot.slane %v274, %v278
    %281 = vmatprep.subr.mxu0 0.0
    %282 = vmatpush1.msra.mxu0 %v273
    %283 = vmatprep.subr.mxu0 0.0
    %284 = vmatpush1.msra.mxu0 %v272
    %285 = vmatprep.subr.mxu0 0.0
    %286 = vmatpush1.msra.mxu0 %v271
    %287 = vmatprep.subr.mxu0 0.0
    %288 = vmatpush1.msra.mxu0 %v270
    %289 = vmatprep.subr.mxu0 0.0
    %290 = vmatpush1.msra.mxu0 %v269
    %291 = vmatprep.subr.mxu0 0.0
    %292 = vmatpush1.msra.mxu0 %v268
    %293 = vmatprep.subr.mxu0 0.0
    %294 = vmatpush1.msra.mxu0 %v267
    %295 = vmatprep.subr.mxu0 0.0
    %296 = vmatpush1.msra.mxu0 %v266
    %297 = vmatprep.subr.mxu0 0.0
    %298 = vmatpush1.msra.mxu0 %v265
    %299 = vmatprep.subr.mxu0 0.0
    %300 = vmatpush1.msra.mxu0 %v264
    %301 = vmatprep.subr.mxu0 0.0
    %302 = vmatpush1.msra.mxu0 %v263
    %303 = vmatprep.subr.mxu0 0.0
    %304 = vmatpush1.msra.mxu0 %v262
    %305 = vmatprep.subr.mxu0 0.0
    %306 = vmatpush1.msra.mxu0 %v261
    %307 = vmatprep.subr.mxu0 0.0
    %308 = vmatpush1.msra.mxu0 %v260
    %309 = vmatprep.subr.mxu0 0.0
    %310 = vmatpush1.msra.mxu0 %v259
    %311 = vmatprep.subr.mxu0 0.0
    %312 = vmatpush1.msra.mxu0 %v258
    %313 = vmatprep.subr.mxu0 0.0
    %314 = vmatpush2.msra.mxu0 0.0
    %315 = vmatprep.subr.mxu0 0.0
    %316 = vmatpush2.msra.mxu0 0.0
    %317 = vmatprep.subr.mxu0 0.0
    %318 = vmatpush2.msra.mxu0 0.0
    %319 = vmatprep.subr.mxu0 0.0
    %320 = vmatpush2.msra.mxu0 0.0
    %321 = vmatprep.subr.mxu0 0.0
    %322 = vmatpush2.msra.mxu0 0.0
    %323 = vmatprep.subr.mxu0 0.0
    %324 = vmatpush2.msra.mxu0 0.0
    %325 = vmatprep.subr.mxu0 0.0
    %326 = vmatpush2.msra.mxu0 0.0
    %327 = vmatprep.subr.mxu0 0.0
    %328 = vmatpush2.msra.mxu0 0.0
    %329 = vmatprep.subr.mxu0 0.0
    %330 = vmatpush2.msra.mxu0 0.0
    %331 = vmatprep.subr.mxu0 0.0
    %332 = vmatpush2.msra.mxu0 0.0
    %333 = vmatprep.subr.mxu0 0.0
    %334 = vmatpush2.msra.mxu0 0.0
    %335 = vmatprep.subr.mxu0 0.0
    %336 = vmatpush2.msra.mxu0 0.0
    %337 = vmatprep.subr.mxu0 0.0
    %338 = vmatpush2.msra.mxu0 0.0
    %339 = vmatprep.subr.mxu0 0.0
    %340 = vmatpush2.msra.mxu0 0.0
    %341 = vmatprep.subr.mxu0 0.0
    %342 = vmatpush2.msra.mxu0 0.0
    %343 = vmatprep.subr.mxu0 0.0
    %344 = vmatpush2.msra.mxu0 0.0
    %345 = vmatprep.mubr.f32.mxu0 0.0
    %346 = vmatmul.mubr.f32.gmra.mxu0 %v256
    %v347 = vpop.f32.mrf.mxu0
    %v348 = vadd.f32 %v279, %v347
    %v349 = vpop.f32.mrf.mxu0
    %350 = vmatprep.mubr.f32.mxu0 0.0
    %351 = vmatmul.mubr.f32.gmra.mxu0 %v257
    %v352 = vpop.f32.mrf.mxu0
    %v353 = vadd.f32 %v279, %v352
    %v354 = vpop.f32.mrf.mxu0
    %355 = vdwg.mxu0
    %v356 = vtanh.pop %v348
    %v357 = vtanh.pop %v353
    %v358 = vld [vmem:[%s7] sm:$0xff]
    %v359 = vld [vmem:[%s7 + $0x8] sm:$0xff]
    %v360 = vld [vmem:[%s7 + $0x10] sm:$0xff]
    %v361 = vld [vmem:[%s7 + $0x18] sm:$0xff]
    %v362 = vld [vmem:[%s7 + $0x20] sm:$0xff]
    %v363 = vld [vmem:[%s7 + $0x28] sm:$0xff]
    %v364 = vld [vmem:[%s7 + $0x30] sm:$0xff]
    %v365 = vld [vmem:[%s7 + $0x38] sm:$0xff]
    %v366 = vld [vmem:[%s7 + $0x40] sm:$0xff]
    %v367 = vld [vmem:[%s7 + $0x48] sm:$0xff]
    %v368 = vld [vmem:[%s7 + $0x50] sm:$0xff]
    %v369 = vld [vmem:[%s7 + $0x58] sm:$0xff]
    %v370 = vld [vmem:[%s7 + $0x60] sm:$0xff]
    %v371 = vld [vmem:[%s7 + $0x68] sm:$0xff]
    %v372 = vld [vmem:[%s7 + $0x70] sm:$0xff]
    %v373 = vld [vmem:[%s7 + $0x78] sm:$0xff]
    %v374 = vld [vmem:[%s8] sm:$0x1]
    %v376 = vlaneseq
    %v377 = vshrl.u32 %v376, 7
    %v378 = vsub.s32 0, %v377
    %v379 = vrot.slane %v374, %v378
    %381 = vmatprep.subr.mxu0 0.0
    %382 = vmatpush1.msra.mxu0 %v373
    %383 = vmatprep.subr.mxu0 0.0
    %384 = vmatpush1.msra.mxu0 %v372
    %385 = vmatprep.subr.mxu0 0.0
    %386 = vmatpush1.msra.mxu0 %v371
    %387 = vmatprep.subr.mxu0 0.0
    %388 = vmatpush1.msra.mxu0 %v370
    %389 = vmatprep.subr.mxu0 0.0
    %390 = vmatpush1.msra.mxu0 %v369
    %391 = vmatprep.subr.mxu0 0.0
    %392 = vmatpush1.msra.mxu0 %v368
    %393 = vmatprep.subr.mxu0 0.0
    %394 = vmatpush1.msra.mxu0 %v367
    %395 = vmatprep.subr.mxu0 0.0
    %396 = vmatpush1.msra.mxu0 %v366
    %397 = vmatprep.subr.mxu0 0.0
    %398 = vmatpush1.msra.mxu0 %v365
    %399 = vmatprep.subr.mxu0 0.0
    %400 = vmatpush1.msra.mxu0 %v364
    %401 = vmatprep.subr.mxu0 0.0
    %402 = vmatpush1.msra.mxu0 %v363
    %403 = vmatprep.subr.mxu0 0.0
    %404 = vmatpush1.msra.mxu0 %v362
    %405 = vmatprep.subr.mxu0 0.0
    %406 = vmatpush1.msra.mxu0 %v361
    %407 = vmatprep.subr.mxu0 0.0
    %408 = vmatpush1.msra.mxu0 %v360
    %409 = vmatprep.subr.mxu0 0.0
    %410 = vmatpush1.msra.mxu0 %v359
    %411 = vmatprep.subr.mxu0 0.0
    %412 = vmatpush1.msra.mxu0 %v358
    %413 = vmatprep.subr.mxu0 0.0
    %414 = vmatpush2.msra.mxu0 0.0
    %415 = vmatprep.subr.mxu0 0.0
    %416 = vmatpush2.msra.mxu0 0.0
    %417 = vmatprep.subr.mxu0 0.0
    %418 = vmatpush2.msra.mxu0 0.0
    %419 = vmatprep.subr.mxu0 0.0
    %420 = vmatpush2.msra.mxu0 0.0
    %421 = vmatprep.subr.mxu0 0.0
    %422 = vmatpush2.msra.mxu0 0.0
    %423 = vmatprep.subr.mxu0 0.0
    %424 = vmatpush2.msra.mxu0 0.0
    %425 = vmatprep.subr.mxu0 0.0
    %426 = vmatpush2.msra.mxu0 0.0
    %427 = vmatprep.subr.mxu0 0.0
    %428 = vmatpush2.msra.mxu0 0.0
    %429 = vmatprep.subr.mxu0 0.0
    %430 = vmatpush2.msra.mxu0 0.0
    %431 = vmatprep.subr.mxu0 0.0
    %432 = vmatpush2.msra.mxu0 0.0
    %433 = vmatprep.subr.mxu0 0.0
    %434 = vmatpush2.msra.mxu0 0.0
    %435 = vmatprep.subr.mxu0 0.0
    %436 = vmatpush2.msra.mxu0 0.0
    %437 = vmatprep.subr.mxu0 0.0
    %438 = vmatpush2.msra.mxu0 0.0
    %439 = vmatprep.subr.mxu0 0.0
    %440 = vmatpush2.msra.mxu0 0.0
    %441 = vmatprep.subr.mxu0 0.0
    %442 = vmatpush2.msra.mxu0 0.0
    %443 = vmatprep.subr.mxu0 0.0
    %444 = vmatpush2.msra.mxu0 0.0
    %445 = vmatprep.mubr.f32.mxu0 0.0
    %446 = vmatmul.mubr.f32.gmra.mxu0 %v356
    %v447 = vpop.f32.mrf.mxu0
    %v448 = vadd.f32 %v379, %v447
    %v449 = vpop.f32.mrf.mxu0
    %450 = vmatprep.mubr.f32.mxu0 0.0
    %451 = vmatmul.mubr.f32.gmra.mxu0 %v357
    %v452 = vpop.f32.mrf.mxu0
    %v453 = vadd.f32 %v379, %v452
    %v454 = vpop.f32.mrf.mxu0
    %455 = vdwg.mxu0
    %456 = vst.msk [vmem:[#allocation7] sm:$0xff] %vm74, %v448
    %457 = vst.msk [vmem:[#allocation7 + $0x8] sm:$0xff] %vm74, %v453
    // Predicated region
    $region46: #{tpu_custom_call.1} parent=1 // pred_check
      _
    $region47: #{tpu_custom_call.1} parent=1 // pred_check_branch
      %459 = sbr.rel (0) target = $region49
    $region48: #{tpu_custom_call.1} parent=1 // pred_region
      %s461 = ssub.s32 256, 256
      %462 = vsyncadd [#allocation4], %s461
      %s463 = sshll.u32 [#allocation7], 4
      %s464 = int_to_ptr.vmem [resolvable:$true] %s463
      %469 = dma.vmem_to_hbm [thread:$0]  %s464, 256, %s9, [#allocation4], 128, 128, 8
    $region49: #{tpu_custom_call.1} parent=1 // pred_fallthru
      _
    // Predicated region
    $region50: #{tpu_custom_call.1} parent=1 // pred_check
      _
    $region51: #{tpu_custom_call.1} parent=1 // pred_check_branch
      %471 = sbr.rel (0) target = $region53
    $region52: #{tpu_custom_call.1} parent=1 // pred_region
      %472 = dma.done [#allocation4], 256
    $region53: #{tpu_custom_call.1} parent=1 // pred_fallthru
      _
    %473 = vsyncpa [#allocation3], 1
    %474 = vsyncpa [#allocation6], 1
    %475 = vsyncpa [#allocation4], 1

</llo_original>
